<compile_context>
chip_gen: v7x
topology: tpu7x:2x2x1
jax: 0.10.0
libtpu: 0.0.40
codegen_flags: <defaults>
</compile_context>

<pallas_src>
import jax
import jax.numpy as jnp
from jax.experimental import pallas as pl
from jax.experimental.pallas import tpu as pltpu

_LANE = 128      # vreg lane width
_SUBLANE = 32    # row-tile multiple covering f32(8)/bf16(16)/int8+fp8(32) packing


def _copy_kernel(x_ref, o_ref):
    # Aligned path: input and output blocks are identical -> pure block copy.
    o_ref[...] = x_ref[...]


def _chomp_slice_kernel(x_ref, o_ref):
    # Small-L fallback: the input block carries the full L axis; the static
    # slice performs the chomp.
    o_ref[...] = x_ref[:, : o_ref.shape[-1]]


def _pick_aligned_tiles(r, l_out, itemsize, budget_bytes):
    """Pick (row_tile, lane_tile) for the (r, l_out) copy when l_out >= 128."""
    lane_max = (l_out // _LANE) * _LANE          # widest 128-multiple lane tile
    rows_fit = budget_bytes // (lane_max * itemsize)
    if rows_fit >= r:
        # Whole row extent in one tile (block == full dim: exempt from the
        # multiple-of-8 sublane rule).
        return r, lane_max
    if rows_fit >= _SUBLANE:
        # Cover (almost) all of L_out per tile - longest contiguous DMA runs -
        # and tile rows to fill the per-buffer budget.
        return (rows_fit // _SUBLANE) * _SUBLANE, lane_max
    # L_out too wide for a budget-sized tile even at the minimum row tile:
    # keep the row tile minimal and cap the lane tile by the budget instead.
    tr = r if r <= _SUBLANE else _SUBLANE
    tl = (budget_bytes // (tr * itemsize)) // _LANE * _LANE
    return tr, min(lane_max, max(_LANE, tl))


def _vmem_limit(tile_bytes):
    """vmem_limit_bytes covering ~4x tile (in+out, double-buffered) + headroom."""
    needed = 4 * tile_bytes + (2 << 20)
    if needed <= (16 << 20):         # fits the smallest (v5e) scoped default
        return None
    # 48 MiB is safe on every generation (v7x physical VMEM is 64 MiB/TC).
    return min(needed, 48 << 20)


def chomp1d(x: jax.Array, chomp_size: int, *, tile_budget_bytes: int = 8 << 20) -> jax.Array:
    """Pallas equivalent of torch Chomp1d: x[:, :, :-chomp_size].

    tile_budget_bytes is the per-buffer VMEM budget; keep it <= ~11 MiB so the
    double-buffered footprint stays within the 48 MiB vmem_limit cap.
    """
    assert chomp_size > 0, "chomp_size must be positive (matches x[..., :-c])"
    n, c, l = x.shape
    l_out = l - chomp_size
    assert l_out > 0, "chomp_size must be smaller than the sequence length"

    itemsize = jnp.dtype(x.dtype).itemsize
    r = n * c
    x2 = x.reshape(r, l)
    out_struct = jax.ShapeDtypeStruct((r, l_out), x.dtype)

    if l_out >= _LANE:
        # Aligned, tiled, pipelined path: lane tiles are multiples of 128, the
        # chomp is expressed purely through the grid extent along L, and the
        # body is an unsliced block copy.  Only the final row / lane tiles may
        # be partial (Pallas edge-masks those DMAs/stores).
        tr, tl = _pick_aligned_tiles(r, l_out, itemsize, tile_budget_bytes)
        gr, gl = pl.cdiv(r, tr), pl.cdiv(l_out, tl)
        kernel = _copy_kernel
        if gl == 1:
            # Lane grid collapsed: ~1-D grid over contiguous row bands.
            grid = (gr,)
            in_spec = pl.BlockSpec((tr, tl), lambda i: (i, 0))
            out_spec = pl.BlockSpec((tr, tl), lambda i: (i, 0))
            dim_sem = ("parallel",)
        else:
            grid = (gr, gl)
            in_spec = pl.BlockSpec((tr, tl), lambda i, j: (i, j))
            out_spec = pl.BlockSpec((tr, tl), lambda i, j: (i, j))
            dim_sem = ("parallel", "parallel")
        tile_bytes = tr * tl * itemsize
    else:
        # Small-L fallback: full-length blocks along the last axis (exempt from
        # the (8,128) rule); the chomp happens via the static in-kernel slice.
        # Amortise the per-step overhead with as many rows per step as fit.
        rows_fit = max(tile_budget_bytes // (l * itemsize), 1)
        if rows_fit >= r or r <= _SUBLANE:
            tr = r
        else:
            tr = max(_SUBLANE, (rows_fit // _SUBLANE) * _SUBLANE)
        kernel = _chomp_slice_kernel
        grid = (pl.cdiv(r, tr),)
        in_spec = pl.BlockSpec((tr, l), lambda i: (i, 0))
        out_spec = pl.BlockSpec((tr, l_out), lambda i: (i, 0))
        dim_sem = ("parallel",)
        tile_bytes = tr * l * itemsize

    y2 = pl.pallas_call(
        kernel,
        out_shape=out_struct,
        grid=grid,
        in_specs=[in_spec],
        out_specs=out_spec,
        compiler_params=pltpu.CompilerParams(
            dimension_semantics=dim_sem,
            vmem_limit_bytes=_vmem_limit(tile_bytes),
        ),
    )(x2)
    return y2.reshape(n, c, l_out)


if __name__ == "__main__":
    key = jax.random.PRNGKey(0)
    k1, k2, k3, k4 = jax.random.split(key, 4)
    chomp_size = 3

    # 1) Small TCN-like shape (exercises the small-L fallback path):
    #    batch=2, channels=4, length=16, chomp = (kernel_size-1)*dilation = 3.
    x_small = jax.random.normal(k1, (2, 4, 16), dtype=jnp.float32)
    y_small = jax.block_until_ready(chomp1d(x_small, chomp_size))
    assert y_small.shape == (2, 4, 13), y_small.shape
    assert jnp.array_equal(y_small, x_small[:, :, :-chomp_size]), "fallback path mismatch"

    # 2) Aligned path with a partial final lane tile: (2,16,303) -> (2,16,300).
    x_t = jax.random.normal(k2, (2, 16, 303), dtype=jnp.float32)
    y_t = jax.block_until_ready(chomp1d(x_t, chomp_size))
    assert jnp.array_equal(y_t, x_t[:, :, :-chomp_size]), "aligned path mismatch"

    # 3) Aligned path where L_out is a multiple of 128 -> lane grid collapses
    #    to a 1-D row grid: (2,16,259) -> (2,16,256).
    x_c = jax.random.normal(k3, (2, 16, 259), dtype=jnp.float32)
    y_c = jax.block_until_ready(chomp1d(x_c, chomp_size))
    assert jnp.array_equal(y_c, x_c[:, :, :-chomp_size]), "collapsed path mismatch"

    # 4) Force a 2-D grid with partial row AND lane edge tiles via a tiny
    #    budget (exercises Pallas edge masking): (4,13,519), chomp 19 -> 500.
    x_m = jax.random.normal(k4, (4, 13, 519), dtype=jnp.float32)
    y_m = jax.block_until_ready(chomp1d(x_m, 19, tile_budget_bytes=32 << 10))
    assert jnp.array_equal(y_m, x_m[:, :, :-19]), "multi-tile path mismatch"

    print("KERNEL_OK")
</pallas_src>

<mosaic_0001>
module attributes {stable_mosaic.version = 11 : i64} {
  func.func @_chomp_slice_kernel(%arg0: i32, %arg1: memref<8x16xf32, #tpu.memory_space<vmem>>, %arg2: memref<8x13xf32, #tpu.memory_space<vmem>>) attributes {dimension_semantics = [#tpu.dimension_semantics<parallel>], iteration_bounds = array<i64: 1>, scalar_prefetch = 0 : i64, scratch_operands = 0 : i64, tpu.core_type = #tpu.core_type<tc>, window_params = [{transform_indices = @transform_0, window_bounds = array<i64: 8, 16>}, {transform_indices = @transform_1, window_bounds = array<i64: 8, 13>}]} {
    %c0 = arith.constant 0 : index
    %c0_0 = arith.constant 0 : index
    %0 = vector.load %arg1[%c0, %c0_0] : memref<8x16xf32, #tpu.memory_space<vmem>>, vector<8x13xf32>
    %c0_1 = arith.constant 0 : index
    %c0_2 = arith.constant 0 : index
    %1 = vector.load %arg2[%c0_1, %c0_2] : memref<8x13xf32, #tpu.memory_space<vmem>>, vector<8x13xf32>
    tpu.vector_store %arg2[%c0_1, %c0_2], %0 {strides = array<i32>} : memref<8x13xf32, #tpu.memory_space<vmem>>, vector<8x13xf32>,
    return
  }
  func.func @transform_0(%arg0: i32) -> (i32, i32) {
    %c0_i32 = arith.constant 0 : i32
    %c0_i32_0 = arith.constant 0 : i32
    return %arg0, %c0_i32 : i32, i32
  }
  func.func @transform_1(%arg0: i32) -> (i32, i32) {
    %c0_i32 = arith.constant 0 : i32
    %c0_i32_0 = arith.constant 0 : i32
    return %arg0, %c0_i32 : i32, i32
  }
}

</mosaic_0001>

<llo_original>
// kernel: tpu_custom_call.1
$region0: #{tpu_custom_call.1}
  #allocation0 [shape = 'u32[]', space=smem, size = 0x4, offset = 0x4, fixed_abs, tag = 'smem constant byte address 0x4 - core index']
  #allocation1 [shape = 'u32[144,128]{1,0:T(1,128)}', space=vmem, size = 0x12000, scoped, tag = 'internal scratch']
  %s0 = inlined_call_operand.hbm [shape: f32[8,16], index: 0, kind: input, shape index: {}]
  %s1 = inlined_call_operand.hbm [shape: f32[8,13], index: 1, kind: output, shape index: {}]
  %s2 = sld [smem:[#allocation0]]
  $region18: #{tpu_custom_call.1} parent=0
    _
  %s4 = ssub.s32 1, %s2
  %s5 = scalar_select 0, %s4, %s2
  $region1: #{tpu_custom_call.1} parent=0
    #allocation2 [shape = 'u8[4096]{0}', space=vmem, size = 0x1000, scoped, tag = 'input window, operand 0, single buffered']
    #allocation3 [shape = 's32[1]{0}', space=sflag, size = 0x4, scoped, tag = 'scoped memory for tpu_custom_call.1']
    #allocation4 [shape = 's32[1]{0}', space=sflag, size = 0x4, scoped, tag = 'scoped memory for tpu_custom_call.1']
    #allocation5 [shape = 'u8[4096]{0}', space=vmem, size = 0x1000, scoped, tag = 'output window, operand 0, single buffered']
    %6 = vsyncpa [#allocation3], 0
    %7 = vsyncpa [#allocation4], 0
    // Predicated region
    $region2: #{tpu_custom_call.1} parent=1 // pred_check
      _
    $region3: #{tpu_custom_call.1} parent=1 // pred_check_branch
      %9 = sbr.rel (0) target = $region5
    $region4: #{tpu_custom_call.1} parent=1 // pred_region
      %s11 = ssub.s32 128, 128
      %12 = vsyncadd [#allocation3], %s11
      %s14 = sshll.u32 [#allocation2], 4
      %s15 = int_to_ptr.vmem [resolvable:$true] %s14
      %17 = dma.hbm_to_vmem [thread:$0]  %s0, 128, %s15, [#allocation3]
    $region5: #{tpu_custom_call.1} parent=1 // pred_fallthru
      _
    // Predicated region
    $region6: #{tpu_custom_call.1} parent=1 // pred_check
      _
    $region7: #{tpu_custom_call.1} parent=1 // pred_check_branch
      %19 = sbr.rel (0) target = $region9
    $region8: #{tpu_custom_call.1} parent=1 // pred_region
      %20 = dma.done [#allocation3], 128
    $region9: #{tpu_custom_call.1} parent=1 // pred_fallthru
      _
    %v21 = vld [vmem:[#allocation2] sm:$0xff]
    %vm22 = vcmask 105472
    %23 = vst.msk [vmem:[#allocation5] sm:$0xff] %vm22, %v21
    // Predicated region
    $region10: #{tpu_custom_call.1} parent=1 // pred_check
      _
    $region11: #{tpu_custom_call.1} parent=1 // pred_check_branch
      %25 = sbr.rel (0) target = $region13
    $region12: #{tpu_custom_call.1} parent=1 // pred_region
      %s27 = ssub.s32 128, 128
      %28 = vsyncadd [#allocation4], %s27
      %s30 = sshll.u32 [#allocation5], 4
      %s31 = int_to_ptr.vmem [resolvable:$true] %s30
      %33 = dma.vmem_to_hbm [thread:$0]  %s31, 128, %s1, [#allocation4]
    $region13: #{tpu_custom_call.1} parent=1 // pred_fallthru
      _
    // Predicated region
    $region14: #{tpu_custom_call.1} parent=1 // pred_check
      _
    $region15: #{tpu_custom_call.1} parent=1 // pred_check_branch
      %35 = sbr.rel (0) target = $region17
    $region16: #{tpu_custom_call.1} parent=1 // pred_region
      %36 = dma.done [#allocation4], 128
    $region17: #{tpu_custom_call.1} parent=1 // pred_fallthru
      _
    %37 = vsyncpa [#allocation3], 1
    %38 = vsyncpa [#allocation4], 1

</llo_original>
